<compile_context>
chip_gen: v7x
topology: tpu7x:2x2x1
jax: 0.10.0
libtpu: 0.0.40
codegen_flags: <defaults>
</compile_context>

<pallas_src>
import jax
import jax.numpy as jnp
from jax.experimental import pallas as pl
from jax.experimental.pallas import tpu as pltpu

_H = 128  # padded hidden width (one full 128-lane vreg)


# ---------------------------------------------------------------------------
# Pallas kernel: 5-layer MLP, concat fused into layer 1, lane-dense hidden=128
# ---------------------------------------------------------------------------
def _discriminator_kernel(x_ref, c_ref,
                          w1x_ref, w1c_ref, b1_ref,
                          w2_ref, b2_ref,
                          w3_ref, b3_ref,
                          w4_ref, b4_ref,
                          w5_ref, b5_ref,
                          out_ref):
    mxu_dtype = w1x_ref.dtype

    # ----- Layer 1 ---------------------------------------------------------
    # x part on the MXU.  The (optionally bf16) cast happens HERE on the VMEM
    # tile: x stays in its native dtype in HBM (no wrapper-side cast copy).
    h = jnp.dot(x_ref[...].astype(mxu_dtype), w1x_ref[...],
                preferred_element_type=jnp.float32)
    h = h + b1_ref[...]

    # c part: the torch.cat is fused as  [x | c] @ W1 == x @ W1_x + c @ W1_c.
    # K = nc (= 4) is far too small for the MXU, so it runs as an unrolled
    # VPU broadcast-FMA chain in otherwise-idle VALU slots (f32 path).
    c_tile = c_ref[...].astype(jnp.float32)          # (TB, nc)
    w1c = w1c_ref[...]                               # (nc, H), f32
    for j in range(c_ref.shape[1]):                  # nc is static -> unrolled
        h = h + c_tile[:, j:j + 1] * w1c[j:j + 1, :]
    h = jnp.maximum(h, 0.0)

    # ----- Hidden layers 2..4 (128-wide, lane-dense) -------------------------
    # MXU operands in the weight dtype (f32 or bf16); accumulation, bias-add
    # and ReLU stay f32 (v5e has no bf16 VPU path).
    for w_ref, b_ref in ((w2_ref, b2_ref), (w3_ref, b3_ref), (w4_ref, b4_ref)):
        h = jnp.dot(h.astype(w_ref.dtype), w_ref[...],
                    preferred_element_type=jnp.float32) + b_ref[...]
        h = jnp.maximum(h, 0.0)

    # ----- Final Linear(128 -> 1): VPU multiply + lane reduce ----------------
    out = jnp.sum(h * w5_ref[...], axis=-1, keepdims=True) + b5_ref[...]
    out_ref[...] = out.astype(out_ref.dtype)


# ---------------------------------------------------------------------------
# Wrapper
# ---------------------------------------------------------------------------
def _cdiv(a, b):
    return -(-a // b)


def _round_up(v, m):
    return ((v + m - 1) // m) * m


def discriminator_forward(x, c, params, *, mxu_dtype=jnp.float32, tb=1024):
    """x: (B, h_dim, 8, 8), c: (B, nc, 1, 1). Returns (B,) float32 logits.

    params: list of 5 (w, b) pairs with w (in_features, out_features),
            hidden width 100, matching the PyTorch module.
    mxu_dtype: dtype of the MXU weight operands (f32 or bf16). Activations
            stay in their native dtype in HBM and are cast in-kernel.
    """
    B = x.shape[0]
    # Flatten / "squeeze" glue only -- NO dtype cast here.  reshape(B, -1)
    # (not squeeze()) keeps the batch dim for B == 1, fixing the latent bug
    # in the original torch code.
    x_flat = x.reshape(B, -1)
    c_sq = c.reshape(B, -1)
    d_x = x_flat.shape[1]
    nc = c_sq.shape[1]
    H = _H

    (w1, b1), (w2, b2), (w3, b3), (w4, b4), (w5, b5) = params

    def pad_w(w, rows, cols, dtype):
        w = jnp.asarray(w, jnp.float32)
        return jnp.pad(w, ((0, rows - w.shape[0]),
                           (0, cols - w.shape[1]))).astype(dtype)

    def pad_b(b, cols):
        b = jnp.asarray(b, jnp.float32).reshape(1, -1)
        return jnp.pad(b, ((0, 0), (0, cols - b.shape[1])))

    # Split W1 for the fused concat; zero-pad hidden width 100 -> 128.
    w1x = pad_w(w1[:d_x, :], d_x, H, mxu_dtype)
    w1c = pad_w(w1[d_x:, :], nc, H, jnp.float32)     # VPU path: stays f32
    w2p = pad_w(w2, H, H, mxu_dtype)
    w3p = pad_w(w3, H, H, mxu_dtype)
    w4p = pad_w(w4, H, H, mxu_dtype)
    # Final layer as a (1, 128) f32 row (VPU path -- no bf16 VPU on v5e).
    w5r = jnp.pad(jnp.asarray(w5, jnp.float32).reshape(1, -1),
                  ((0, 0), (0, H - w5.shape[0])))
    b1p, b2p, b3p, b4p = (pad_b(b, H) for b in (b1, b2, b3, b4))
    b5p = jnp.asarray(b5, jnp.float32).reshape(1, 1)

    # ---- Batch tiling -------------------------------------------------------
    in_itemsize = x_flat.dtype.itemsize
    mxu_itemsize = jnp.dtype(mxu_dtype).itemsize
    weight_bytes = ((d_x * H + 3 * H * H) * mxu_itemsize
                    + (nc * H + 4 * H + H + 1) * 4)

    num_tiles = _cdiv(B, tb)
    if B >= 16:
        # Keep >= 2 grid steps so ("parallel",) can shard the batch over
        # v7x's two TensorCores (no-op on single-TC v5e / v6e).
        num_tiles = max(num_tiles, 2)
    TB = _round_up(_cdiv(B, num_tiles), 8)

    # VMEM guard: double-buffered x/c/out tiles + (double-buffered) resident
    # weights must fit comfortably under v7x's 64 MiB physical VMEM.
    budget = 24 * 1024 * 1024
    row_bytes = 2 * ((d_x + nc) * in_itemsize + 4)
    max_tb = max(8, ((budget - 2 * weight_bytes) // row_bytes) // 8 * 8)
    TB = min(TB, max_tb)

    # Re-balance so the tail padding stays < 8 rows per tile.
    num_tiles = _cdiv(B, TB)
    TB = _round_up(_cdiv(B, num_tiles), 8)
    B_pad = num_tiles * TB

    if B_pad != B:
        # TODO(synk): for B not already a multiple of 8 this still materializes
        # one padded HBM copy of x; a scalar-prefetch row count + pl.when-masked
        # tail tile would remove it entirely.
        x_flat = jnp.pad(x_flat, ((0, B_pad - B), (0, 0)))
        c_sq = jnp.pad(c_sq, ((0, B_pad - B), (0, 0)))
    grid = (num_tiles,)

    def row_spec(shape):
        return pl.BlockSpec(shape, lambda i: (i, 0))

    def resident(shape):
        # Constant index_map -> fetched once, stays VMEM-resident across the
        # batch grid.
        return pl.BlockSpec(shape, lambda i: (0, 0))

    cost = pl.CostEstimate(
        flops=2 * B_pad * (d_x * H + nc * H + 3 * H * H + H),
        transcendentals=0,
        bytes_accessed=(B_pad * (d_x + nc) * in_itemsize   # x + c streamed
                        + B_pad * 4                        # logits written
                        + weight_bytes),                   # resident weights
    )

    out = pl.pallas_call(
        _discriminator_kernel,
        out_shape=jax.ShapeDtypeStruct((B_pad, 1), jnp.float32),
        grid=grid,
        in_specs=[
            row_spec((TB, d_x)),        # x tile (native dtype, cast in-kernel)
            row_spec((TB, nc)),         # c tile (native dtype)
            resident((d_x, H)),         # W1_x (mxu_dtype)
            resident((nc, H)),          # W1_c (f32, VPU FMA path)
            resident((1, H)),           # b1
            resident((H, H)),           # W2
            resident((1, H)),           # b2
            resident((H, H)),           # W3
            resident((1, H)),           # b3
            resident((H, H)),           # W4
            resident((1, H)),           # b4
            resident((1, H)),           # W5 row (f32, VPU)
            resident((1, 1)),           # b5
        ],
        out_specs=row_spec((TB, 1)),
        compiler_params=pltpu.CompilerParams(
            dimension_semantics=("parallel",),
            vmem_limit_bytes=32 * 1024 * 1024),
        cost_estimate=cost,
    )(x_flat, c_sq, w1x, w1c, b1p, w2p, b2p, w3p, b3p, w4p, b4p, w5r, b5p)

    # Always return shape (B,) (torch `.squeeze()` would collapse B==1 to a
    # scalar; we intentionally keep the batch dim).
    return jnp.squeeze(out[:B], axis=1)


# ---------------------------------------------------------------------------
# Deterministic parameter init (kaiming_normal_, fan_in, relu; biases = 0)
# ---------------------------------------------------------------------------
def init_params(key, d_in):
    dims = [(d_in, 100), (100, 100), (100, 100), (100, 100), (100, 1)]
    params = []
    for fan_in, fan_out in dims:
        key, sub = jax.random.split(key)
        std = (2.0 / fan_in) ** 0.5            # kaiming normal, gain for relu
        w = std * jax.random.normal(sub, (fan_in, fan_out), dtype=jnp.float32)
        b = jnp.zeros((fan_out,), dtype=jnp.float32)
        params.append((w, b))
    return params


def _reference(x, c, params):
    B = x.shape[0]
    o = jnp.concatenate([x.reshape(B, -1), c.reshape(B, -1)], axis=1)
    h = o
    for i, (w, b) in enumerate(params):
        h = h @ w + b.reshape(1, -1)
        if i < len(params) - 1:
            h = jnp.maximum(h, 0.0)
    return jnp.squeeze(h, axis=1)


if __name__ == "__main__":
    # Shapes implied by the module: x -> (B, h_dim, 8, 8), c -> (B, nc, 1, 1)
    B, h_dim, nc = 2, 4, 4
    d_in = h_dim * 8 * 8 + nc                  # 260

    key = jax.random.PRNGKey(0)
    kx, kc, kp = jax.random.split(key, 3)
    x = jax.random.normal(kx, (B, h_dim, 8, 8), dtype=jnp.float32)
    c = jax.random.normal(kc, (B, nc, 1, 1), dtype=jnp.float32)
    params = init_params(kp, d_in)

    # --- small-batch f32 path (single tile) ---
    y = discriminator_forward(x, c, params)
    jax.block_until_ready(y)
    ref = _reference(x, c, params)
    assert y.shape == (B,)
    assert jnp.allclose(y, ref, atol=1e-3, rtol=1e-3)

    # --- multi-tile grid path: B=1040 -> TB=520, zero padded rows, grid=(2,) ---
    B2 = 1040
    kx2, kc2 = jax.random.split(jax.random.PRNGKey(1))
    x2 = jax.random.normal(kx2, (B2, h_dim, 8, 8), dtype=jnp.float32)
    c2 = jax.random.normal(kc2, (B2, nc, 1, 1), dtype=jnp.float32)
    y2 = discriminator_forward(x2, c2, params)
    jax.block_until_ready(y2)
    ref2 = _reference(x2, c2, params)
    assert y2.shape == (B2,)
    assert jnp.allclose(y2, ref2, atol=1e-3, rtol=1e-3)

    # --- B == 1 works (torch `.squeeze()` latent bug fixed via reshape) ---
    y1 = discriminator_forward(x[:1], c[:1], params)
    jax.block_until_ready(y1)
    assert y1.shape == (1,)
    assert jnp.allclose(y1, ref[:1], atol=1e-3, rtol=1e-3)

    # --- bf16 MXU-operand path (x stays f32 in HBM; cast in-kernel) ---
    y_bf16 = discriminator_forward(x2, c2, params, mxu_dtype=jnp.bfloat16)
    jax.block_until_ready(y_bf16)
    assert y_bf16.shape == (B2,)
    assert jnp.allclose(y_bf16, ref2, atol=2e-1, rtol=1e-1)

    print("KERNEL_OK")
</pallas_src>

<mosaic_0001>
module attributes {stable_mosaic.version = 11 : i64} {
  func.func @_discriminator_kernel(%arg0: i32, %arg1: memref<8x256xf32, #tpu.memory_space<vmem>>, %arg2: memref<8x4xf32, #tpu.memory_space<vmem>>, %arg3: memref<256x128xf32, #tpu.memory_space<vmem>>, %arg4: memref<4x128xf32, #tpu.memory_space<vmem>>, %arg5: memref<1x128xf32, #tpu.memory_space<vmem>>, %arg6: memref<128x128xf32, #tpu.memory_space<vmem>>, %arg7: memref<1x128xf32, #tpu.memory_space<vmem>>, %arg8: memref<128x128xf32, #tpu.memory_space<vmem>>, %arg9: memref<1x128xf32, #tpu.memory_space<vmem>>, %arg10: memref<128x128xf32, #tpu.memory_space<vmem>>, %arg11: memref<1x128xf32, #tpu.memory_space<vmem>>, %arg12: memref<1x128xf32, #tpu.memory_space<vmem>>, %arg13: memref<1x1xf32, #tpu.memory_space<vmem>>, %arg14: memref<8x1xf32, #tpu.memory_space<vmem>>) attributes {dimension_semantics = [#tpu.dimension_semantics<parallel>], iteration_bounds = array<i64: 1>, scalar_prefetch = 0 : i64, scratch_operands = 0 : i64, tpu.core_type = #tpu.core_type<tc>, window_params = [{transform_indices = @transform_0, window_bounds = array<i64: 8, 256>}, {transform_indices = @transform_1, window_bounds = array<i64: 8, 4>}, {pipeline_mode = #tpu.pipeline_mode<synchronous>, transform_indices = @transform_2, window_bounds = array<i64: 256, 128>}, {pipeline_mode = #tpu.pipeline_mode<synchronous>, transform_indices = @transform_3, window_bounds = array<i64: 4, 128>}, {pipeline_mode = #tpu.pipeline_mode<synchronous>, transform_indices = @transform_4, window_bounds = array<i64: 1, 128>}, {pipeline_mode = #tpu.pipeline_mode<synchronous>, transform_indices = @transform_5, window_bounds = array<i64: 128, 128>}, {pipeline_mode = #tpu.pipeline_mode<synchronous>, transform_indices = @transform_6, window_bounds = array<i64: 1, 128>}, {pipeline_mode = #tpu.pipeline_mode<synchronous>, transform_indices = @transform_7, window_bounds = array<i64: 128, 128>}, {pipeline_mode = #tpu.pipeline_mode<synchronous>, transform_indices = @transform_8, window_bounds = array<i64: 1, 128>}, {pipeline_mode = #tpu.pipeline_mode<synchronous>, transform_indices = @transform_9, window_bounds = array<i64: 128, 128>}, {pipeline_mode = #tpu.pipeline_mode<synchronous>, transform_indices = @transform_10, window_bounds = array<i64: 1, 128>}, {pipeline_mode = #tpu.pipeline_mode<synchronous>, transform_indices = @transform_11, window_bounds = array<i64: 1, 128>}, {pipeline_mode = #tpu.pipeline_mode<synchronous>, transform_indices = @transform_12, window_bounds = array<i64: 1, 1>}, {transform_indices = @transform_13, window_bounds = array<i64: 8, 1>}]} {
    %c0 = arith.constant 0 : index
    %c0_0 = arith.constant 0 : index
    %0 = vector.load %arg1[%c0, %c0_0] : memref<8x256xf32, #tpu.memory_space<vmem>>, vector<8x256xf32>
    %c0_1 = arith.constant 0 : index
    %c0_2 = arith.constant 0 : index
    %1 = vector.load %arg3[%c0_1, %c0_2] : memref<256x128xf32, #tpu.memory_space<vmem>>, vector<256x128xf32>
    %cst = arith.constant dense<0.000000e+00> : vector<8x128xf32>
    %2 = tpu.matmul %0, %1, %cst {dimension_numbers = #tpu.dot_dimension_numbers<[1], [0], [0], [1], [0, 0, 1, 1], [], []>} : vector<8x256xf32>, vector<256x128xf32>, vector<8x128xf32> -> vector<8x128xf32>
    %c0_3 = arith.constant 0 : index
    %c0_4 = arith.constant 0 : index
    %3 = vector.load %arg5[%c0_3, %c0_4] : memref<1x128xf32, #tpu.memory_space<vmem>>, vector<1x128xf32>
    %4 = vector.broadcast %3 : vector<1x128xf32> to vector<8x128xf32>
    %5 = arith.addf %2, %4 : vector<8x128xf32>
    %c0_5 = arith.constant 0 : index
    %c0_6 = arith.constant 0 : index
    %6 = vector.load %arg2[%c0_5, %c0_6] : memref<8x4xf32, #tpu.memory_space<vmem>>, vector<8x4xf32>
    %c0_7 = arith.constant 0 : index
    %c0_8 = arith.constant 0 : index
    %7 = vector.load %arg4[%c0_7, %c0_8] : memref<4x128xf32, #tpu.memory_space<vmem>>, vector<4x128xf32>
    %8 = vector.extract_strided_slice %6 {offsets = [0, 0], sizes = [8, 1], strides = [1, 1]} : vector<8x4xf32> to vector<8x1xf32>
    %9 = vector.extract_strided_slice %7 {offsets = [0, 0], sizes = [1, 128], strides = [1, 1]} : vector<4x128xf32> to vector<1x128xf32>
    %10 = vector.broadcast %8 : vector<8x1xf32> to vector<8x128xf32>
    %11 = vector.broadcast %9 : vector<1x128xf32> to vector<8x128xf32>
    %12 = arith.mulf %10, %11 : vector<8x128xf32>
    %13 = arith.addf %5, %12 : vector<8x128xf32>
    %14 = vector.extract_strided_slice %6 {offsets = [0, 1], sizes = [8, 1], strides = [1, 1]} : vector<8x4xf32> to vector<8x1xf32>
    %15 = vector.extract_strided_slice %7 {offsets = [1, 0], sizes = [1, 128], strides = [1, 1]} : vector<4x128xf32> to vector<1x128xf32>
    %16 = vector.broadcast %14 : vector<8x1xf32> to vector<8x128xf32>
    %17 = vector.broadcast %15 : vector<1x128xf32> to vector<8x128xf32>
    %18 = arith.mulf %16, %17 : vector<8x128xf32>
    %19 = arith.addf %13, %18 : vector<8x128xf32>
    %20 = vector.extract_strided_slice %6 {offsets = [0, 2], sizes = [8, 1], strides = [1, 1]} : vector<8x4xf32> to vector<8x1xf32>
    %21 = vector.extract_strided_slice %7 {offsets = [2, 0], sizes = [1, 128], strides = [1, 1]} : vector<4x128xf32> to vector<1x128xf32>
    %22 = vector.broadcast %20 : vector<8x1xf32> to vector<8x128xf32>
    %23 = vector.broadcast %21 : vector<1x128xf32> to vector<8x128xf32>
    %24 = arith.mulf %22, %23 : vector<8x128xf32>
    %25 = arith.addf %19, %24 : vector<8x128xf32>
    %26 = vector.extract_strided_slice %6 {offsets = [0, 3], sizes = [8, 1], strides = [1, 1]} : vector<8x4xf32> to vector<8x1xf32>
    %27 = vector.extract_strided_slice %7 {offsets = [3, 0], sizes = [1, 128], strides = [1, 1]} : vector<4x128xf32> to vector<1x128xf32>
    %28 = vector.broadcast %26 : vector<8x1xf32> to vector<8x128xf32>
    %29 = vector.broadcast %27 : vector<1x128xf32> to vector<8x128xf32>
    %30 = arith.mulf %28, %29 : vector<8x128xf32>
    %31 = arith.addf %25, %30 : vector<8x128xf32>
    %cst_9 = arith.constant 0.000000e+00 : f32
    %32 = vector.broadcast %cst_9 : f32 to vector<8x128xf32>
    %33 = arith.maximumf %31, %32 : vector<8x128xf32>
    %c0_10 = arith.constant 0 : index
    %c0_11 = arith.constant 0 : index
    %34 = vector.load %arg6[%c0_10, %c0_11] : memref<128x128xf32, #tpu.memory_space<vmem>>, vector<128x128xf32>
    %cst_12 = arith.constant dense<0.000000e+00> : vector<8x128xf32>
    %35 = tpu.matmul %33, %34, %cst_12 {dimension_numbers = #tpu.dot_dimension_numbers<[1], [0], [0], [1], [0, 0, 1, 1], [], []>} : vector<8x128xf32>, vector<128x128xf32>, vector<8x128xf32> -> vector<8x128xf32>
    %c0_13 = arith.constant 0 : index
    %c0_14 = arith.constant 0 : index
    %36 = vector.load %arg7[%c0_13, %c0_14] : memref<1x128xf32, #tpu.memory_space<vmem>>, vector<1x128xf32>
    %37 = vector.broadcast %36 : vector<1x128xf32> to vector<8x128xf32>
    %38 = arith.addf %35, %37 : vector<8x128xf32>
    %cst_15 = arith.constant 0.000000e+00 : f32
    %39 = vector.broadcast %cst_15 : f32 to vector<8x128xf32>
    %40 = arith.maximumf %38, %39 : vector<8x128xf32>
    %c0_16 = arith.constant 0 : index
    %c0_17 = arith.constant 0 : index
    %41 = vector.load %arg8[%c0_16, %c0_17] : memref<128x128xf32, #tpu.memory_space<vmem>>, vector<128x128xf32>
    %cst_18 = arith.constant dense<0.000000e+00> : vector<8x128xf32>
    %42 = tpu.matmul %40, %41, %cst_18 {dimension_numbers = #tpu.dot_dimension_numbers<[1], [0], [0], [1], [0, 0, 1, 1], [], []>} : vector<8x128xf32>, vector<128x128xf32>, vector<8x128xf32> -> vector<8x128xf32>
    %c0_19 = arith.constant 0 : index
    %c0_20 = arith.constant 0 : index
    %43 = vector.load %arg9[%c0_19, %c0_20] : memref<1x128xf32, #tpu.memory_space<vmem>>, vector<1x128xf32>
    %44 = vector.broadcast %43 : vector<1x128xf32> to vector<8x128xf32>
    %45 = arith.addf %42, %44 : vector<8x128xf32>
    %cst_21 = arith.constant 0.000000e+00 : f32
    %46 = vector.broadcast %cst_21 : f32 to vector<8x128xf32>
    %47 = arith.maximumf %45, %46 : vector<8x128xf32>
    %c0_22 = arith.constant 0 : index
    %c0_23 = arith.constant 0 : index
    %48 = vector.load %arg10[%c0_22, %c0_23] : memref<128x128xf32, #tpu.memory_space<vmem>>, vector<128x128xf32>
    %cst_24 = arith.constant dense<0.000000e+00> : vector<8x128xf32>
    %49 = tpu.matmul %47, %48, %cst_24 {dimension_numbers = #tpu.dot_dimension_numbers<[1], [0], [0], [1], [0, 0, 1, 1], [], []>} : vector<8x128xf32>, vector<128x128xf32>, vector<8x128xf32> -> vector<8x128xf32>
    %c0_25 = arith.constant 0 : index
    %c0_26 = arith.constant 0 : index
    %50 = vector.load %arg11[%c0_25, %c0_26] : memref<1x128xf32, #tpu.memory_space<vmem>>, vector<1x128xf32>
    %51 = vector.broadcast %50 : vector<1x128xf32> to vector<8x128xf32>
    %52 = arith.addf %49, %51 : vector<8x128xf32>
    %cst_27 = arith.constant 0.000000e+00 : f32
    %53 = vector.broadcast %cst_27 : f32 to vector<8x128xf32>
    %54 = arith.maximumf %52, %53 : vector<8x128xf32>
    %c0_28 = arith.constant 0 : index
    %c0_29 = arith.constant 0 : index
    %55 = vector.load %arg12[%c0_28, %c0_29] : memref<1x128xf32, #tpu.memory_space<vmem>>, vector<1x128xf32>
    %56 = vector.broadcast %55 : vector<1x128xf32> to vector<8x128xf32>
    %57 = arith.mulf %54, %56 : vector<8x128xf32>
    %cst_30 = arith.constant dense<0.000000e+00> : vector<8xf32>
    %58 = vector.multi_reduction <add>, %57, %cst_30 [1] : vector<8x128xf32> to vector<8xf32>
    %59 = vector.shape_cast %58 : vector<8xf32> to vector<8x1xf32>
    %c0_31 = arith.constant 0 : index
    %c0_32 = arith.constant 0 : index
    %60 = vector.load %arg13[%c0_31, %c0_32] : memref<1x1xf32, #tpu.memory_space<vmem>>, vector<1x1xf32>
    %61 = vector.broadcast %60 : vector<1x1xf32> to vector<8x1xf32>
    %62 = arith.addf %59, %61 : vector<8x1xf32>
    %c0_33 = arith.constant 0 : index
    %c0_34 = arith.constant 0 : index
    %63 = vector.load %arg14[%c0_33, %c0_34] : memref<8x1xf32, #tpu.memory_space<vmem>>, vector<8x1xf32>
    tpu.vector_store %arg14[%c0_33, %c0_34], %62 {strides = array<i32>} : memref<8x1xf32, #tpu.memory_space<vmem>>, vector<8x1xf32>,
    return
  }
  func.func @transform_0(%arg0: i32) -> (i32, i32) {
    %c0_i32 = arith.constant 0 : i32
    %c0_i32_0 = arith.constant 0 : i32
    return %arg0, %c0_i32 : i32, i32
  }
  func.func @transform_1(%arg0: i32) -> (i32, i32) {
    %c0_i32 = arith.constant 0 : i32
    %c0_i32_0 = arith.constant 0 : i32
    return %arg0, %c0_i32 : i32, i32
  }
  func.func @transform_2(%arg0: i32) -> (i32, i32) {
    %c0_i32 = arith.constant 0 : i32
    %c0_i32_0 = arith.constant 0 : i32
    %c0_i32_1 = arith.constant 0 : i32
    return %c0_i32, %c0_i32_0 : i32, i32
  }
  func.func @transform_3(%arg0: i32) -> (i32, i32) {
    %c0_i32 = arith.constant 0 : i32
    %c0_i32_0 = arith.constant 0 : i32
    %c0_i32_1 = arith.constant 0 : i32
    return %c0_i32, %c0_i32_0 : i32, i32
  }
  func.func @transform_4(%arg0: i32) -> (i32, i32) {
    %c0_i32 = arith.constant 0 : i32
    %c0_i32_0 = arith.constant 0 : i32
    %c0_i32_1 = arith.constant 0 : i32
    return %c0_i32, %c0_i32_0 : i32, i32
  }
  func.func @transform_5(%arg0: i32) -> (i32, i32) {
    %c0_i32 = arith.constant 0 : i32
    %c0_i32_0 = arith.constant 0 : i32
    %c0_i32_1 = arith.constant 0 : i32
    return %c0_i32, %c0_i32_0 : i32, i32
  }
  func.func @transform_6(%arg0: i32) -> (i32, i32) {
    %c0_i32 = arith.constant 0 : i32
    %c0_i32_0 = arith.constant 0 : i32
    %c0_i32_1 = arith.constant 0 : i32
    return %c0_i32, %c0_i32_0 : i32, i32
  }
  func.func @transform_7(%arg0: i32) -> (i32, i32) {
    %c0_i32 = arith.constant 0 : i32
    %c0_i32_0 = arith.constant 0 : i32
    %c0_i32_1 = arith.constant 0 : i32
    return %c0_i32, %c0_i32_0 : i32, i32
  }
  func.func @transform_8(%arg0: i32) -> (i32, i32) {
    %c0_i32 = arith.constant 0 : i32
    %c0_i32_0 = arith.constant 0 : i32
    %c0_i32_1 = arith.constant 0 : i32
    return %c0_i32, %c0_i32_0 : i32, i32
  }
  func.func @transform_9(%arg0: i32) -> (i32, i32) {
    %c0_i32 = arith.constant 0 : i32
    %c0_i32_0 = arith.constant 0 : i32
    %c0_i32_1 = arith.constant 0 : i32
    return %c0_i32, %c0_i32_0 : i32, i32
  }
  func.func @transform_10(%arg0: i32) -> (i32, i32) {
    %c0_i32 = arith.constant 0 : i32
    %c0_i32_0 = arith.constant 0 : i32
    %c0_i32_1 = arith.constant 0 : i32
    return %c0_i32, %c0_i32_0 : i32, i32
  }
  func.func @transform_11(%arg0: i32) -> (i32, i32) {
    %c0_i32 = arith.constant 0 : i32
    %c0_i32_0 = arith.constant 0 : i32
    %c0_i32_1 = arith.constant 0 : i32
    return %c0_i32, %c0_i32_0 : i32, i32
  }
  func.func @transform_12(%arg0: i32) -> (i32, i32) {
    %c0_i32 = arith.constant 0 : i32
    %c0_i32_0 = arith.constant 0 : i32
    %c0_i32_1 = arith.constant 0 : i32
    return %c0_i32, %c0_i32_0 : i32, i32
  }
  func.func @transform_13(%arg0: i32) -> (i32, i32) {
    %c0_i32 = arith.constant 0 : i32
    %c0_i32_0 = arith.constant 0 : i32
    return %arg0, %c0_i32 : i32, i32
  }
}

</mosaic_0001>

<llo_original>
// kernel: tpu_custom_call.1
$region0: #{tpu_custom_call.1}
  #allocation0 [shape = 'u32[]', space=smem, size = 0x4, offset = 0x4, fixed_abs, tag = 'smem constant byte address 0x4 - core index']
  #allocation1 [shape = 'u32[144,128]{1,0:T(1,128)}', space=vmem, size = 0x12000, scoped, tag = 'internal scratch']
  #allocation2 [shape = 'f32[1,1]{1,0:T(1,128)S(1)}', space=vmem, size = 0x200, scoped, tag = 'scoped memory for tpu_custom_call.1']
  %s0 = inlined_call_operand.hbm [shape: f32[8,256], index: 0, kind: input, shape index: {}]
  %s1 = inlined_call_operand.vmem [shape: f32[8,4], index: 1, kind: input, shape index: {}]
  %s2 = inlined_call_operand.hbm [shape: f32[256,128], index: 2, kind: input, shape index: {}]
  %s3 = inlined_call_operand.vmem [shape: f32[4,128], index: 3, kind: input, shape index: {}]
  %s4 = inlined_call_operand.vmem [shape: f32[1,128], index: 4, kind: input, shape index: {}]
  %s5 = inlined_call_operand.hbm [shape: f32[128,128], index: 5, kind: input, shape index: {}]
  %s6 = inlined_call_operand.vmem [shape: f32[1,128], index: 6, kind: input, shape index: {}]
  %s7 = inlined_call_operand.hbm [shape: f32[128,128], index: 7, kind: input, shape index: {}]
  %s8 = inlined_call_operand.vmem [shape: f32[1,128], index: 8, kind: input, shape index: {}]
  %s9 = inlined_call_operand.hbm [shape: f32[128,128], index: 9, kind: input, shape index: {}]
  %s10 = inlined_call_operand.vmem [shape: f32[1,128], index: 10, kind: input, shape index: {}]
  %s11 = inlined_call_operand.vmem [shape: f32[1,128], index: 11, kind: input, shape index: {}]
  %s12 = inlined_call_operand.<no memory space> [shape: f32[1,1], index: 12, kind: input, shape index: {}]
  %s13 = inlined_call_operand.vmem [shape: f32[8,1], index: 13, kind: output, shape index: {}]
  %s14 = sld [smem:[#allocation0]]
  $region82: #{tpu_custom_call.1} parent=0
    _
  %s16 = ssub.s32 1, %s14
  %s17 = scalar_select 0, %s16, %s14
  %v18 = vstv %s12
  %19 = vst [vmem:[#allocation2] sm:$0x1] %v18
  $region1: #{tpu_custom_call.1} parent=0
    #allocation3 [shape = 'u8[8192]{0}', space=vmem, size = 0x2000, scoped, tag = 'input window, operand 0, single buffered']
    #allocation4 [shape = 's32[1]{0}', space=sflag, size = 0x4, scoped, tag = 'scoped memory for tpu_custom_call.1']
    #allocation5 [shape = 'u8[131072]{0}', space=vmem, size = 0x20000, scoped, tag = 'input window, operand 2, single buffered']
    #allocation6 [shape = 's32[1]{0}', space=sflag, size = 0x4, scoped, tag = 'scoped memory for tpu_custom_call.1']
    #allocation7 [shape = 'u8[65536]{0}', space=vmem, size = 0x10000, scoped, tag = 'input window, operand 5, single buffered']
    #allocation8 [shape = 'u8[65536]{0}', space=vmem, size = 0x10000, scoped, tag = 'input window, operand 7, single buffered']
    #allocation9 [shape = 's32[1]{0}', space=sflag, size = 0x4, scoped, tag = 'scoped memory for tpu_custom_call.1']
    #allocation10 [shape = 'u8[65536]{0}', space=vmem, size = 0x10000, scoped, tag = 'input window, operand 9, single buffered']
    %20 = vsyncpa [#allocation4], 0
    %21 = vsyncpa [#allocation6], 0
    %22 = vsyncpa [#allocation9], 0
    // Predicated region
    $region2: #{tpu_custom_call.1} parent=1 // pred_check
      _
    $region3: #{tpu_custom_call.1} parent=1 // pred_check_branch
      %24 = sbr.rel (0) target = $region5
    $region4: #{tpu_custom_call.1} parent=1 // pred_region
      %s26 = ssub.s32 256, 256
      %27 = vsyncadd [#allocation4], %s26
      %s29 = sshll.u32 [#allocation3], 4
      %s30 = int_to_ptr.vmem [resolvable:$true] %s29
      %32 = dma.hbm_to_vmem [thread:$0]  %s0, 256, %s30, [#allocation4]
    $region5: #{tpu_custom_call.1} parent=1 // pred_fallthru
      _
    // Predicated region
    $region6: #{tpu_custom_call.1} parent=1 // pred_check
      _
    $region7: #{tpu_custom_call.1} parent=1 // pred_check_branch
      %34 = sbr.rel (0) target = $region9
    $region8: #{tpu_custom_call.1} parent=1 // pred_region
      _
    $region9: #{tpu_custom_call.1} parent=1 // pred_fallthru
      _
    // Predicated region
    $region10: #{tpu_custom_call.1} parent=1 // pred_check
      _
    $region11: #{tpu_custom_call.1} parent=1 // pred_check_branch
      %36 = sbr.rel (0) target = $region13
    $region12: #{tpu_custom_call.1} parent=1 // pred_region
      %s38 = ssub.s32 4096, 4096
      %39 = vsyncadd [#allocation6], %s38
      %s40 = sshll.u32 [#allocation5], 4
      %s41 = int_to_ptr.vmem [resolvable:$true] %s40
      %46 = dma.hbm_to_vmem [thread:$0]  %s2, 4096, %s41, [#allocation6], 128, 128, 8
    $region13: #{tpu_custom_call.1} parent=1 // pred_fallthru
      _
    // Predicated region
    $region14: #{tpu_custom_call.1} parent=1 // pred_check
      _
    $region15: #{tpu_custom_call.1} parent=1 // pred_check_branch
      %48 = sbr.rel (0) target = $region17
    $region16: #{tpu_custom_call.1} parent=1 // pred_region
      _
    $region17: #{tpu_custom_call.1} parent=1 // pred_fallthru
      _
    // Predicated region
    $region18: #{tpu_custom_call.1} parent=1 // pred_check
      _
    $region19: #{tpu_custom_call.1} parent=1 // pred_check_branch
      %50 = sbr.rel (0) target = $region21
    $region20: #{tpu_custom_call.1} parent=1 // pred_region
      _
    $region21: #{tpu_custom_call.1} parent=1 // pred_fallthru
      _
    // Predicated region
    $region22: #{tpu_custom_call.1} parent=1 // pred_check
      _
    $region23: #{tpu_custom_call.1} parent=1 // pred_check_branch
      %52 = sbr.rel (0) target = $region25
    $region24: #{tpu_custom_call.1} parent=1 // pred_region
      %s54 = ssub.s32 2048, 2048
      %55 = vsyncadd [#allocation6], %s54
      %s56 = sshll.u32 [#allocation7], 4
      %s57 = int_to_ptr.vmem [resolvable:$true] %s56
      %62 = dma.hbm_to_vmem [thread:$0]  %s5, 2048, %s57, [#allocation6], 128, 128, 8
    $region25: #{tpu_custom_call.1} parent=1 // pred_fallthru
      _
    // Predicated region
    $region26: #{tpu_custom_call.1} parent=1 // pred_check
      _
    $region27: #{tpu_custom_call.1} parent=1 // pred_check_branch
      %64 = sbr.rel (0) target = $region29
    $region28: #{tpu_custom_call.1} parent=1 // pred_region
      _
    $region29: #{tpu_custom_call.1} parent=1 // pred_fallthru
      _
    // Predicated region
    $region30: #{tpu_custom_call.1} parent=1 // pred_check
      _
    $region31: #{tpu_custom_call.1} parent=1 // pred_check_branch
      %66 = sbr.rel (0) target = $region33
    $region32: #{tpu_custom_call.1} parent=1 // pred_region
      %s68 = ssub.s32 2048, 2048
      %69 = vsyncadd [#allocation9], %s68
      %s70 = sshll.u32 [#allocation8], 4
      %s71 = int_to_ptr.vmem [resolvable:$true] %s70
      %76 = dma.hbm_to_vmem [thread:$0]  %s7, 2048, %s71, [#allocation9], 128, 128, 8
    $region33: #{tpu_custom_call.1} parent=1 // pred_fallthru
      _
    // Predicated region
    $region34: #{tpu_custom_call.1} parent=1 // pred_check
      _
    $region35: #{tpu_custom_call.1} parent=1 // pred_check_branch
      %78 = sbr.rel (0) target = $region37
    $region36: #{tpu_custom_call.1} parent=1 // pred_region
      _
    $region37: #{tpu_custom_call.1} parent=1 // pred_fallthru
      _
    // Predicated region
    $region38: #{tpu_custom_call.1} parent=1 // pred_check
      _
    $region39: #{tpu_custom_call.1} parent=1 // pred_check_branch
      %80 = sbr.rel (0) target = $region41
    $region40: #{tpu_custom_call.1} parent=1 // pred_region
      %s82 = ssub.s32 2048, 2048
      %83 = vsyncadd [#allocation9], %s82
      %s84 = sshll.u32 [#allocation10], 4
      %s85 = int_to_ptr.vmem [resolvable:$true] %s84
      %90 = dma.hbm_to_vmem [thread:$0]  %s9, 2048, %s85, [#allocation9], 128, 128, 8
    $region41: #{tpu_custom_call.1} parent=1 // pred_fallthru
      _
    // Predicated region
    $region42: #{tpu_custom_call.1} parent=1 // pred_check
      _
    $region43: #{tpu_custom_call.1} parent=1 // pred_check_branch
      %92 = sbr.rel (0) target = $region45
    $region44: #{tpu_custom_call.1} parent=1 // pred_region
      _
    $region45: #{tpu_custom_call.1} parent=1 // pred_fallthru
      _
    // Predicated region
    $region46: #{tpu_custom_call.1} parent=1 // pred_check
      _
    $region47: #{tpu_custom_call.1} parent=1 // pred_check_branch
      %94 = sbr.rel (0) target = $region49
    $region48: #{tpu_custom_call.1} parent=1 // pred_region
      _
    $region49: #{tpu_custom_call.1} parent=1 // pred_fallthru
      _
    // Predicated region
    $region50: #{tpu_custom_call.1} parent=1 // pred_check
      _
    $region51: #{tpu_custom_call.1} parent=1 // pred_check_branch
      %96 = sbr.rel (0) target = $region53
    $region52: #{tpu_custom_call.1} parent=1 // pred_region
      _
    $region53: #{tpu_custom_call.1} parent=1 // pred_fallthru
      _
    // Predicated region
    $region54: #{tpu_custom_call.1} parent=1 // pred_check
      _
    $region55: #{tpu_custom_call.1} parent=1 // pred_check_branch
      %98 = sbr.rel (0) target = $region57
    $region56: #{tpu_custom_call.1} parent=1 // pred_region
      %99 = dma.done [#allocation4], 256
    $region57: #{tpu_custom_call.1} parent=1 // pred_fallthru
      _
    // Predicated region
    $region58: #{tpu_custom_call.1} parent=1 // pred_check
      _
    $region59: #{tpu_custom_call.1} parent=1 // pred_check_branch
      %101 = sbr.rel (0) target = $region61
    $region60: #{tpu_custom_call.1} parent=1 // pred_region
      %102 = dma.done [#allocation6], 4096
    $region61: #{tpu_custom_call.1} parent=1 // pred_fallthru
      _
    // Predicated region
    $region62: #{tpu_custom_call.1} parent=1 // pred_check
      _
    $region63: #{tpu_custom_call.1} parent=1 // pred_check_branch
      %104 = sbr.rel (0) target = $region65
    $region64: #{tpu_custom_call.1} parent=1 // pred_region
      %105 = dma.done [#allocation6], 2048
    $region65: #{tpu_custom_call.1} parent=1 // pred_fallthru
      _
    // Predicated region
    $region66: #{tpu_custom_call.1} parent=1 // pred_check
      _
    $region67: #{tpu_custom_call.1} parent=1 // pred_check_branch
      %107 = sbr.rel (0) target = $region69
    $region68: #{tpu_custom_call.1} parent=1 // pred_region
      %108 = dma.done [#allocation9], 2048
    $region69: #{tpu_custom_call.1} parent=1 // pred_fallthru
      _
    // Predicated region
    $region70: #{tpu_custom_call.1} parent=1 // pred_check
      _
    $region71: #{tpu_custom_call.1} parent=1 // pred_check_branch
      %110 = sbr.rel (0) target = $region73
    $region72: #{tpu_custom_call.1} parent=1 // pred_region
      %111 = dma.done [#allocation9], 2048
    $region73: #{tpu_custom_call.1} parent=1 // pred_fallthru
      _
    %v112 = vld [vmem:[#allocation3] sm:$0xff]
    %v113 = vld [vmem:[#allocation3 + $0x8] sm:$0xff]
    %v114 = vld [vmem:[#allocation5] sm:$0xff]
    %v115 = vld [vmem:[#allocation5 + $0x8] sm:$0xff]
    %v116 = vld [vmem:[#allocation5 + $0x10] sm:$0xff]
    %v117 = vld [vmem:[#allocation5 + $0x18] sm:$0xff]
    %v118 = vld [vmem:[#allocation5 + $0x20] sm:$0xff]
    %v119 = vld [vmem:[#allocation5 + $0x28] sm:$0xff]
    %v120 = vld [vmem:[#allocation5 + $0x30] sm:$0xff]
    %v121 = vld [vmem:[#allocation5 + $0x38] sm:$0xff]
    %v122 = vld [vmem:[#allocation5 + $0x40] sm:$0xff]
    %v123 = vld [vmem:[#allocation5 + $0x48] sm:$0xff]
    %v124 = vld [vmem:[#allocation5 + $0x50] sm:$0xff]
    %v125 = vld [vmem:[#allocation5 + $0x58] sm:$0xff]
    %v126 = vld [vmem:[#allocation5 + $0x60] sm:$0xff]
    %v127 = vld [vmem:[#allocation5 + $0x68] sm:$0xff]
    %v128 = vld [vmem:[#allocation5 + $0x70] sm:$0xff]
    %v129 = vld [vmem:[#allocation5 + $0x78] sm:$0xff]
    %v130 = vld [vmem:[#allocation5 + $0x80] sm:$0xff]
    %v131 = vld [vmem:[#allocation5 + $0x88] sm:$0xff]
    %v132 = vld [vmem:[#allocation5 + $0x90] sm:$0xff]
    %v133 = vld [vmem:[#allocation5 + $0x98] sm:$0xff]
    %v134 = vld [vmem:[#allocation5 + $0xa0] sm:$0xff]
    %v135 = vld [vmem:[#allocation5 + $0xa8] sm:$0xff]
    %v136 = vld [vmem:[#allocation5 + $0xb0] sm:$0xff]
    %v137 = vld [vmem:[#allocation5 + $0xb8] sm:$0xff]
    %v138 = vld [vmem:[#allocation5 + $0xc0] sm:$0xff]
    %v139 = vld [vmem:[#allocation5 + $0xc8] sm:$0xff]
    %v140 = vld [vmem:[#allocation5 + $0xd0] sm:$0xff]
    %v141 = vld [vmem:[#allocation5 + $0xd8] sm:$0xff]
    %v142 = vld [vmem:[#allocation5 + $0xe0] sm:$0xff]
    %v143 = vld [vmem:[#allocation5 + $0xe8] sm:$0xff]
    %v144 = vld [vmem:[#allocation5 + $0xf0] sm:$0xff]
    %v145 = vld [vmem:[#allocation5 + $0xf8] sm:$0xff]
    %v146 = vld [vmem:[%s4] sm:$0x1]
    %v148 = vlaneseq
    %v149 = vshrl.u32 %v148, 7
    %v150 = vsub.s32 0, %v149
    %v151 = vrot.slane %v146, %v150
    %153 = vmatprep.subr.mxu0 0.0
    %154 = vmatpush1.msra.mxu0 %v114
    %155 = vmatprep.subr.mxu0 0.0
    %156 = vmatpush1.msra.mxu0 %v115
    %157 = vmatprep.subr.mxu0 0.0
    %158 = vmatpush1.msra.mxu0 %v116
    %159 = vmatprep.subr.mxu0 0.0
    %160 = vmatpush1.msra.mxu0 %v117
    %161 = vmatprep.subr.mxu0 0.0
    %162 = vmatpush1.msra.mxu0 %v118
    %163 = vmatprep.subr.mxu0 0.0
    %164 = vmatpush1.msra.mxu0 %v119
    %165 = vmatprep.subr.mxu0 0.0
    %166 = vmatpush1.msra.mxu0 %v120
    %167 = vmatprep.subr.mxu0 0.0
    %168 = vmatpush1.msra.mxu0 %v121
    %169 = vmatprep.subr.mxu0 0.0
    %170 = vmatpush1.msra.mxu0 %v122
    %171 = vmatprep.subr.mxu0 0.0
    %172 = vmatpush1.msra.mxu0 %v123
    %173 = vmatprep.subr.mxu0 0.0
    %174 = vmatpush1.msra.mxu0 %v124
    %175 = vmatprep.subr.mxu0 0.0
    %176 = vmatpush1.msra.mxu0 %v125
    %177 = vmatprep.subr.mxu0 0.0
    %178 = vmatpush1.msra.mxu0 %v126
    %179 = vmatprep.subr.mxu0 0.0
    %180 = vmatpush1.msra.mxu0 %v127
    %181 = vmatprep.subr.mxu0 0.0
    %182 = vmatpush1.msra.mxu0 %v128
    %183 = vmatprep.subr.mxu0 0.0
    %184 = vmatpush1.msra.mxu0 %v129
    %185 = vmatprep.subr.mxu0 0.0
    %186 = vmatpush1.msra.mxu0 %v130
    %187 = vmatprep.subr.mxu0 0.0
    %188 = vmatpush1.msra.mxu0 %v131
    %189 = vmatprep.subr.mxu0 0.0
    %190 = vmatpush1.msra.mxu0 %v132
    %191 = vmatprep.subr.mxu0 0.0
    %192 = vmatpush1.msra.mxu0 %v133
    %193 = vmatprep.subr.mxu0 0.0
    %194 = vmatpush1.msra.mxu0 %v134
    %195 = vmatprep.subr.mxu0 0.0
    %196 = vmatpush1.msra.mxu0 %v135
    %197 = vmatprep.subr.mxu0 0.0
    %198 = vmatpush1.msra.mxu0 %v136
    %199 = vmatprep.subr.mxu0 0.0
    %200 = vmatpush1.msra.mxu0 %v137
    %201 = vmatprep.subr.mxu0 0.0
    %202 = vmatpush1.msra.mxu0 %v138
    %203 = vmatprep.subr.mxu0 0.0
    %204 = vmatpush1.msra.mxu0 %v139
    %205 = vmatprep.subr.mxu0 0.0
    %206 = vmatpush1.msra.mxu0 %v140
    %207 = vmatprep.subr.mxu0 0.0
    %208 = vmatpush1.msra.mxu0 %v141
    %209 = vmatprep.subr.mxu0 0.0
    %210 = vmatpush1.msra.mxu0 %v142
    %211 = vmatprep.subr.mxu0 0.0
    %212 = vmatpush1.msra.mxu0 %v143
    %213 = vmatprep.subr.mxu0 0.0
    %214 = vmatpush1.msra.mxu0 %v144
    %215 = vmatprep.subr.mxu0 0.0
    %216 = vmatpush1.msra.mxu0 %v145
    %217 = vmatprep.mubr.f32.mxu0 %v113
    %218 = vmatmul.mubr.f32.gmra.mrb[0].mxu0 %v112
    %v219 = vpop.f32.mrb[0].mxu0
    %v220 = vadd.f32 %v151, %v219
    %v221 = vpop.f32.mrb[0].mxu0
    %222 = vdwg.mxu0
    %v223 = vld [vmem:[%s1] sm:$0xff]
    %v224 = vld [vmem:[%s3] sm:$0xf]
    %226 = vset.pattern.permute.xlu0 0
    %227 = vperm.xlu0 %226, %v223
    %v228 = vpop.permute.xlu0 %227
    %v230 = vlaneseq
    %v231 = vshrl.u32 %v230, 7
    %v232 = vsub.s32 0, %v231
    %v233 = vrot.slane %v224, %v232
    %v234 = vmul.f32 %v228, %v233
    %v235 = vadd.f32 %v220, %v234
    %236 = vset.pattern.permute.xlu0 1
    %237 = vperm.xlu0 %236, %v223
    %v238 = vpop.permute.xlu0 %237
    %v240 = vlaneseq
    %v241 = vshrl.u32 %v240, 7
    %v242 = vsub.s32 1, %v241
    %v243 = vrot.slane %v224, %v242
    %v244 = vmul.f32 %v238, %v243
    %v245 = vadd.f32 %v235, %v244
    %246 = vset.pattern.permute.xlu0 2
    %247 = vperm.xlu0 %246, %v223
    %v248 = vpop.permute.xlu0 %247
    %v250 = vlaneseq
    %v251 = vshrl.u32 %v250, 7
    %v252 = vsub.s32 2, %v251
    %v253 = vrot.slane %v224, %v252
    %v254 = vmul.f32 %v248, %v253
    %v255 = vadd.f32 %v245, %v254
    %256 = vset.pattern.permute.xlu0 3
    %257 = vperm.xlu0 %256, %v223
    %v258 = vpop.permute.xlu0 %257
    %v260 = vlaneseq
    %v261 = vshrl.u32 %v260, 7
    %v262 = vsub.s32 3, %v261
    %v263 = vrot.slane %v224, %v262
    %v264 = vmul.f32 %v258, %v263
    %v265 = vadd.f32 %v255, %v264
    %v266 = vmax.f32 %v265, 0.0
    %v267 = vld [vmem:[#allocation7] sm:$0xff]
    %v268 = vld [vmem:[#allocation7 + $0x8] sm:$0xff]
    %v269 = vld [vmem:[#allocation7 + $0x10] sm:$0xff]
    %v270 = vld [vmem:[#allocation7 + $0x18] sm:$0xff]
    %v271 = vld [vmem:[#allocation7 + $0x20] sm:$0xff]
    %v272 = vld [vmem:[#allocation7 + $0x28] sm:$0xff]
    %v273 = vld [vmem:[#allocation7 + $0x30] sm:$0xff]
    %v274 = vld [vmem:[#allocation7 + $0x38] sm:$0xff]
    %v275 = vld [vmem:[#allocation7 + $0x40] sm:$0xff]
    %v276 = vld [vmem:[#allocation7 + $0x48] sm:$0xff]
    %v277 = vld [vmem:[#allocation7 + $0x50] sm:$0xff]
    %v278 = vld [vmem:[#allocation7 + $0x58] sm:$0xff]
    %v279 = vld [vmem:[#allocation7 + $0x60] sm:$0xff]
    %v280 = vld [vmem:[#allocation7 + $0x68] sm:$0xff]
    %v281 = vld [vmem:[#allocation7 + $0x70] sm:$0xff]
    %v282 = vld [vmem:[#allocation7 + $0x78] sm:$0xff]
    %v283 = vld [vmem:[%s6] sm:$0x1]
    %v285 = vlaneseq
    %v286 = vshrl.u32 %v285, 7
    %v287 = vsub.s32 0, %v286
    %v288 = vrot.slane %v283, %v287
    %290 = vmatprep.subr.mxu0 0.0
    %291 = vmatpush1.msra.mxu0 %v267
    %292 = vmatprep.subr.mxu0 0.0
    %293 = vmatpush1.msra.mxu0 %v268
    %294 = vmatprep.subr.mxu0 0.0
    %295 = vmatpush1.msra.mxu0 %v269
    %296 = vmatprep.subr.mxu0 0.0
    %297 = vmatpush1.msra.mxu0 %v270
    %298 = vmatprep.subr.mxu0 0.0
    %299 = vmatpush1.msra.mxu0 %v271
    %300 = vmatprep.subr.mxu0 0.0
    %301 = vmatpush1.msra.mxu0 %v272
    %302 = vmatprep.subr.mxu0 0.0
    %303 = vmatpush1.msra.mxu0 %v273
    %304 = vmatprep.subr.mxu0 0.0
    %305 = vmatpush1.msra.mxu0 %v274
    %306 = vmatprep.subr.mxu0 0.0
    %307 = vmatpush1.msra.mxu0 %v275
    %308 = vmatprep.subr.mxu0 0.0
    %309 = vmatpush1.msra.mxu0 %v276
    %310 = vmatprep.subr.mxu0 0.0
    %311 = vmatpush1.msra.mxu0 %v277
    %312 = vmatprep.subr.mxu0 0.0
    %313 = vmatpush1.msra.mxu0 %v278
    %314 = vmatprep.subr.mxu0 0.0
    %315 = vmatpush1.msra.mxu0 %v279
    %316 = vmatprep.subr.mxu0 0.0
    %317 = vmatpush1.msra.mxu0 %v280
    %318 = vmatprep.subr.mxu0 0.0
    %319 = vmatpush1.msra.mxu0 %v281
    %320 = vmatprep.subr.mxu0 0.0
    %321 = vmatpush1.msra.mxu0 %v282
    %322 = vmatprep.subr.mxu0 0.0
    %323 = vmatpush1.msra.mxu0 0.0
    %324 = vmatprep.subr.mxu0 0.0
    %325 = vmatpush1.msra.mxu0 0.0
    %326 = vmatprep.subr.mxu0 0.0
    %327 = vmatpush1.msra.mxu0 0.0
    %328 = vmatprep.subr.mxu0 0.0
    %329 = vmatpush1.msra.mxu0 0.0
    %330 = vmatprep.subr.mxu0 0.0
    %331 = vmatpush1.msra.mxu0 0.0
    %332 = vmatprep.subr.mxu0 0.0
    %333 = vmatpush1.msra.mxu0 0.0
    %334 = vmatprep.subr.mxu0 0.0
    %335 = vmatpush1.msra.mxu0 0.0
    %336 = vmatprep.subr.mxu0 0.0
    %337 = vmatpush1.msra.mxu0 0.0
    %338 = vmatprep.subr.mxu0 0.0
    %339 = vmatpush1.msra.mxu0 0.0
    %340 = vmatprep.subr.mxu0 0.0
    %341 = vmatpush1.msra.mxu0 0.0
    %342 = vmatprep.subr.mxu0 0.0
    %343 = vmatpush1.msra.mxu0 0.0
    %344 = vmatprep.subr.mxu0 0.0
    %345 = vmatpush1.msra.mxu0 0.0
    %346 = vmatprep.subr.mxu0 0.0
    %347 = vmatpush1.msra.mxu0 0.0
    %348 = vmatprep.subr.mxu0 0.0
    %349 = vmatpush1.msra.mxu0 0.0
    %350 = vmatprep.subr.mxu0 0.0
    %351 = vmatpush1.msra.mxu0 0.0
    %352 = vmatprep.subr.mxu0 0.0
    %353 = vmatpush1.msra.mxu0 0.0
    %354 = vmatprep.mubr.f32.mxu0 0.0
    %355 = vmatmul.mubr.f32.gmra.mrb[0].mxu0 %v266
    %v356 = vpop.f32.mrb[0].mxu0
    %v357 = vadd.f32 %v288, %v356
    %v358 = vpop.f32.mrb[0].mxu0
    %359 = vdwg.mxu0
    %v360 = vmax.f32 %v357, 0.0
    %v361 = vld [vmem:[#allocation8] sm:$0xff]
    %v362 = vld [vmem:[#allocation8 + $0x8] sm:$0xff]
    %v363 = vld [vmem:[#allocation8 + $0x10] sm:$0xff]
    %v364 = vld [vmem:[#allocation8 + $0x18] sm:$0xff]
    %v365 = vld [vmem:[#allocation8 + $0x20] sm:$0xff]
    %v366 = vld [vmem:[#allocation8 + $0x28] sm:$0xff]
    %v367 = vld [vmem:[#allocation8 + $0x30] sm:$0xff]
    %v368 = vld [vmem:[#allocation8 + $0x38] sm:$0xff]
    %v369 = vld [vmem:[#allocation8 + $0x40] sm:$0xff]
    %v370 = vld [vmem:[#allocation8 + $0x48] sm:$0xff]
    %v371 = vld [vmem:[#allocation8 + $0x50] sm:$0xff]
    %v372 = vld [vmem:[#allocation8 + $0x58] sm:$0xff]
    %v373 = vld [vmem:[#allocation8 + $0x60] sm:$0xff]
    %v374 = vld [vmem:[#allocation8 + $0x68] sm:$0xff]
    %v375 = vld [vmem:[#allocation8 + $0x70] sm:$0xff]
    %v376 = vld [vmem:[#allocation8 + $0x78] sm:$0xff]
    %v377 = vld [vmem:[%s8] sm:$0x1]
    %v379 = vlaneseq
    %v380 = vshrl.u32 %v379, 7
    %v381 = vsub.s32 0, %v380
    %v382 = vrot.slane %v377, %v381
    %384 = vmatprep.subr.mxu0 0.0
    %385 = vmatpush1.msra.mxu0 %v361
    %386 = vmatprep.subr.mxu0 0.0
    %387 = vmatpush1.msra.mxu0 %v362
    %388 = vmatprep.subr.mxu0 0.0
    %389 = vmatpush1.msra.mxu0 %v363
    %390 = vmatprep.subr.mxu0 0.0
    %391 = vmatpush1.msra.mxu0 %v364
    %392 = vmatprep.subr.mxu0 0.0
    %393 = vmatpush1.msra.mxu0 %v365
    %394 = vmatprep.subr.mxu0 0.0
    %395 = vmatpush1.msra.mxu0 %v366
    %396 = vmatprep.subr.mxu0 0.0
    %397 = vmatpush1.msra.mxu0 %v367
    %398 = vmatprep.subr.mxu0 0.0
    %399 = vmatpush1.msra.mxu0 %v368
    %400 = vmatprep.subr.mxu0 0.0
    %401 = vmatpush1.msra.mxu0 %v369
    %402 = vmatprep.subr.mxu0 0.0
    %403 = vmatpush1.msra.mxu0 %v370
    %404 = vmatprep.subr.mxu0 0.0
    %405 = vmatpush1.msra.mxu0 %v371
    %406 = vmatprep.subr.mxu0 0.0
    %407 = vmatpush1.msra.mxu0 %v372
    %408 = vmatprep.subr.mxu0 0.0
    %409 = vmatpush1.msra.mxu0 %v373
    %410 = vmatprep.subr.mxu0 0.0
    %411 = vmatpush1.msra.mxu0 %v374
    %412 = vmatprep.subr.mxu0 0.0
    %413 = vmatpush1.msra.mxu0 %v375
    %414 = vmatprep.subr.mxu0 0.0
    %415 = vmatpush1.msra.mxu0 %v376
    %416 = vmatprep.subr.mxu0 0.0
    %417 = vmatpush1.msra.mxu0 0.0
    %418 = vmatprep.subr.mxu0 0.0
    %419 = vmatpush1.msra.mxu0 0.0
    %420 = vmatprep.subr.mxu0 0.0
    %421 = vmatpush1.msra.mxu0 0.0
    %422 = vmatprep.subr.mxu0 0.0
    %423 = vmatpush1.msra.mxu0 0.0
    %424 = vmatprep.subr.mxu0 0.0
    %425 = vmatpush1.msra.mxu0 0.0
    %426 = vmatprep.subr.mxu0 0.0
    %427 = vmatpush1.msra.mxu0 0.0
    %428 = vmatprep.subr.mxu0 0.0
    %429 = vmatpush1.msra.mxu0 0.0
    %430 = vmatprep.subr.mxu0 0.0
    %431 = vmatpush1.msra.mxu0 0.0
    %432 = vmatprep.subr.mxu0 0.0
    %433 = vmatpush1.msra.mxu0 0.0
    %434 = vmatprep.subr.mxu0 0.0
    %435 = vmatpush1.msra.mxu0 0.0
    %436 = vmatprep.subr.mxu0 0.0
    %437 = vmatpush1.msra.mxu0 0.0
    %438 = vmatprep.subr.mxu0 0.0
    %439 = vmatpush1.msra.mxu0 0.0
    %440 = vmatprep.subr.mxu0 0.0
    %441 = vmatpush1.msra.mxu0 0.0
    %442 = vmatprep.subr.mxu0 0.0
    %443 = vmatpush1.msra.mxu0 0.0
    %444 = vmatprep.subr.mxu0 0.0
    %445 = vmatpush1.msra.mxu0 0.0
    %446 = vmatprep.subr.mxu0 0.0
    %447 = vmatpush1.msra.mxu0 0.0
    %448 = vmatprep.mubr.f32.mxu0 0.0
    %449 = vmatmul.mubr.f32.gmra.mrb[0].mxu0 %v360
    %v450 = vpop.f32.mrb[0].mxu0
    %v451 = vadd.f32 %v382, %v450
    %v452 = vpop.f32.mrb[0].mxu0
    %453 = vdwg.mxu0
    %v454 = vmax.f32 %v451, 0.0
    %v455 = vld [vmem:[#allocation10] sm:$0xff]
    %v456 = vld [vmem:[#allocation10 + $0x8] sm:$0xff]
    %v457 = vld [vmem:[#allocation10 + $0x10] sm:$0xff]
    %v458 = vld [vmem:[#allocation10 + $0x18] sm:$0xff]
    %v459 = vld [vmem:[#allocation10 + $0x20] sm:$0xff]
    %v460 = vld [vmem:[#allocation10 + $0x28] sm:$0xff]
    %v461 = vld [vmem:[#allocation10 + $0x30] sm:$0xff]
    %v462 = vld [vmem:[#allocation10 + $0x38] sm:$0xff]
    %v463 = vld [vmem:[#allocation10 + $0x40] sm:$0xff]
    %v464 = vld [vmem:[#allocation10 + $0x48] sm:$0xff]
    %v465 = vld [vmem:[#allocation10 + $0x50] sm:$0xff]
    %v466 = vld [vmem:[#allocation10 + $0x58] sm:$0xff]
    %v467 = vld [vmem:[#allocation10 + $0x60] sm:$0xff]
    %v468 = vld [vmem:[#allocation10 + $0x68] sm:$0xff]
    %v469 = vld [vmem:[#allocation10 + $0x70] sm:$0xff]
    %v470 = vld [vmem:[#allocation10 + $0x78] sm:$0xff]
    %v471 = vld [vmem:[%s10] sm:$0x1]
    %v473 = vlaneseq
    %v474 = vshrl.u32 %v473, 7
    %v475 = vsub.s32 0, %v474
    %v476 = vrot.slane %v471, %v475
    %478 = vmatprep.subr.mxu0 0.0
    %479 = vmatpush1.msra.mxu0 %v455
    %480 = vmatprep.subr.mxu0 0.0
    %481 = vmatpush1.msra.mxu0 %v456
    %482 = vmatprep.subr.mxu0 0.0
    %483 = vmatpush1.msra.mxu0 %v457
    %484 = vmatprep.subr.mxu0 0.0
    %485 = vmatpush1.msra.mxu0 %v458
    %486 = vmatprep.subr.mxu0 0.0
    %487 = vmatpush1.msra.mxu0 %v459
    %488 = vmatprep.subr.mxu0 0.0
    %489 = vmatpush1.msra.mxu0 %v460
    %490 = vmatprep.subr.mxu0 0.0
    %491 = vmatpush1.msra.mxu0 %v461
    %492 = vmatprep.subr.mxu0 0.0
    %493 = vmatpush1.msra.mxu0 %v462
    %494 = vmatprep.subr.mxu0 0.0
    %495 = vmatpush1.msra.mxu0 %v463
    %496 = vmatprep.subr.mxu0 0.0
    %497 = vmatpush1.msra.mxu0 %v464
    %498 = vmatprep.subr.mxu0 0.0
    %499 = vmatpush1.msra.mxu0 %v465
    %500 = vmatprep.subr.mxu0 0.0
    %501 = vmatpush1.msra.mxu0 %v466
    %502 = vmatprep.subr.mxu0 0.0
    %503 = vmatpush1.msra.mxu0 %v467
    %504 = vmatprep.subr.mxu0 0.0
    %505 = vmatpush1.msra.mxu0 %v468
    %506 = vmatprep.subr.mxu0 0.0
    %507 = vmatpush1.msra.mxu0 %v469
    %508 = vmatprep.subr.mxu0 0.0
    %509 = vmatpush1.msra.mxu0 %v470
    %510 = vmatprep.subr.mxu0 0.0
    %511 = vmatpush1.msra.mxu0 0.0
    %512 = vmatprep.subr.mxu0 0.0
    %513 = vmatpush1.msra.mxu0 0.0
    %514 = vmatprep.subr.mxu0 0.0
    %515 = vmatpush1.msra.mxu0 0.0
    %516 = vmatprep.subr.mxu0 0.0
    %517 = vmatpush1.msra.mxu0 0.0
    %518 = vmatprep.subr.mxu0 0.0
    %519 = vmatpush1.msra.mxu0 0.0
    %520 = vmatprep.subr.mxu0 0.0
    %521 = vmatpush1.msra.mxu0 0.0
    %522 = vmatprep.subr.mxu0 0.0
    %523 = vmatpush1.msra.mxu0 0.0
    %524 = vmatprep.subr.mxu0 0.0
    %525 = vmatpush1.msra.mxu0 0.0
    %526 = vmatprep.subr.mxu0 0.0
    %527 = vmatpush1.msra.mxu0 0.0
    %528 = vmatprep.subr.mxu0 0.0
    %529 = vmatpush1.msra.mxu0 0.0
    %530 = vmatprep.subr.mxu0 0.0
    %531 = vmatpush1.msra.mxu0 0.0
    %532 = vmatprep.subr.mxu0 0.0
    %533 = vmatpush1.msra.mxu0 0.0
    %534 = vmatprep.subr.mxu0 0.0
    %535 = vmatpush1.msra.mxu0 0.0
    %536 = vmatprep.subr.mxu0 0.0
    %537 = vmatpush1.msra.mxu0 0.0
    %538 = vmatprep.subr.mxu0 0.0
    %539 = vmatpush1.msra.mxu0 0.0
    %540 = vmatprep.subr.mxu0 0.0
    %541 = vmatpush1.msra.mxu0 0.0
    %542 = vmatprep.mubr.f32.mxu0 0.0
    %543 = vmatmul.mubr.f32.gmra.mrb[0].mxu0 %v454
    %v544 = vpop.f32.mrb[0].mxu0
    %v545 = vadd.f32 %v476, %v544
    %v546 = vpop.f32.mrb[0].mxu0
    %547 = vdwg.mxu0
    %v548 = vmax.f32 %v545, 0.0
    %v549 = vld [vmem:[%s11] sm:$0x1]
    %v551 = vlaneseq
    %v552 = vshrl.u32 %v551, 7
    %v553 = vsub.s32 0, %v552
    %v554 = vrot.slane %v549, %v553
    %v556 = vmul.f32 %v548, %v554
    %557 = vadd.xlane.f32.xlu0 %v556
    %v558 = vpop.xlane.xlu0 %557
    %v559 = vld [vmem:[#allocation2] sm:$0x1]
    %v561 = vlaneseq
    %v562 = vshrl.u32 %v561, 7
    %v563 = vsub.s32 0, %v562
    %v564 = vrot.slane %v559, %v563
    %v566 = vadd.f32 %v558, %v564
    %vm567 = vcmask 7168
    %568 = vst.msk [vmem:[%s13] sm:$0xff] %vm567, %v566
    // Predicated region
    $region74: #{tpu_custom_call.1} parent=1 // pred_check
      _
    $region75: #{tpu_custom_call.1} parent=1 // pred_check_branch
      %570 = sbr.rel (0) target = $region77
    $region76: #{tpu_custom_call.1} parent=1 // pred_region
      _
    $region77: #{tpu_custom_call.1} parent=1 // pred_fallthru
      _
    // Predicated region
    $region78: #{tpu_custom_call.1} parent=1 // pred_check
      _
    $region79: #{tpu_custom_call.1} parent=1 // pred_check_branch
      %572 = sbr.rel (0) target = $region81
    $region80: #{tpu_custom_call.1} parent=1 // pred_region
      _
    $region81: #{tpu_custom_call.1} parent=1 // pred_fallthru
      _
    %573 = vsyncpa [#allocation4], 1
    %574 = vsyncpa [#allocation6], 1
    %575 = vsyncpa [#allocation9], 1

</llo_original>
